<compile_context>
chip_gen: v7x
topology: tpu7x:2x2x1
jax: 0.10.0
libtpu: 0.0.40
codegen_flags: <defaults>
</compile_context>

<pallas_src>
import functools

import jax
import jax.numpy as jnp
from jax import lax
from jax.experimental import pallas as pl
from jax.experimental.pallas import tpu as pltpu


def _vmem_limit_bytes():
    """Generation-aware VMEM budget: ~3/4 of physical, capped at 100 MiB."""
    try:
        cap = int(pltpu.get_tpu_info().vmem_capacity_bytes)
    except Exception:
        cap = 64 * 1024 * 1024            # conservative default (v7x: 64 MiB per TC)
    return int(min(cap * 3 // 4, 100 * 1024 * 1024))


_VMEM_LIMIT = _vmem_limit_bytes()


def _pool_out_dim(d):
    # 3x3 window, stride 2, padding 1 (also matches the stride-2 conv output size)
    return (d - 1) // 2 + 1


# ----------------------------------------------------------------------------
# InputProjectionA: fused stack of MaxPool2d(kernel=3, stride=2, padding=1)
# ----------------------------------------------------------------------------
def _pool_selection_bank(w_in, w_out):
    """(w_in, w_out) 0/1 matrix that picks source column 2*j (stride-2 subsample)."""
    c = jnp.arange(w_in)[:, None]
    j = jnp.arange(w_out)[None, :]
    return (c == 2 * j).astype(jnp.float32)


def _choose_plane_block(num_planes, h, w, vmem_limit):
    """Planes per grid step: as large as the VMEM budget allows, while keeping
    at least 2 grid steps so both v7x TensorCores get work."""
    lanes = ((w + 2 + 127) // 128) * 128
    rows = ((h + 2 + 7) // 8) * 8
    per_plane = 4 * rows * lanes * 4               # in (x2 buf) + scratch + out, f32, rough
    budget = max(vmem_limit // 2, 4 * 1024 * 1024)
    cap = max(1, int(budget // per_plane))
    cap = min(cap, max(1, num_planes // 2))        # keep >= 2 grid steps when possible
    best = 1
    for cand in range(1, cap + 1):
        if num_planes % cand == 0:
            best = cand
    return best


def _pool_stack_kernel(*refs, sampling_times, tb, stage_dims):
    sel_refs = refs[:sampling_times]
    x_ref = refs[sampling_times]
    o_ref = refs[sampling_times + 1]
    pad_ref = refs[sampling_times + 2]            # ONE scratch reused by every stage
    neg = float(jnp.finfo(jnp.float32).min)       # finite "minus huge": no -inf arithmetic
    # (finite inputs assumed; a literal -inf/NaN image would diverge from PyTorch)

    cur = x_ref[...].astype(jnp.float32)          # (tb, H0, W0)
    for s, (hs, ws, ohs, ows) in enumerate(stage_dims):
        # halo rows/cols built in VMEM only; later (smaller) stages reuse the
        # top-left corner of the same scratch (scratch VMEM is not summed per stage)
        pad_ref[:, 0:1, 0:ws + 2] = jnp.full((tb, 1, ws + 2), neg, jnp.float32)
        pad_ref[:, hs + 1:hs + 2, 0:ws + 2] = jnp.full((tb, 1, ws + 2), neg, jnp.float32)
        pad_ref[:, 1:hs + 1, 0:1] = jnp.full((tb, hs, 1), neg, jnp.float32)
        pad_ref[:, 1:hs + 1, ws + 1:ws + 2] = jnp.full((tb, hs, 1), neg, jnp.float32)
        pad_ref[:, 1:hs + 1, 1:ws + 1] = cur

        # 3-tap row max at the stride-2 output rows via sublane-strided loads
        # (only OH rows of VPU work), then 3-tap column max via contiguous slices.
        r = pad_ref[:, pl.ds(0, ohs, 2), 0:ws + 2]
        r = jnp.maximum(r, pad_ref[:, pl.ds(1, ohs, 2), 0:ws + 2])
        r = jnp.maximum(r, pad_ref[:, pl.ds(2, ohs, 2), 0:ws + 2])       # (tb, ohs, ws+2)
        cm = jnp.maximum(jnp.maximum(r[:, :, 0:ws], r[:, :, 1:ws + 1]),
                         r[:, :, 2:ws + 2])                              # (tb, ohs, ws)

        # stride-2 column pick: one hoisted 0/1 selection matmul (exact in f32)
        picked = jnp.dot(cm.reshape(tb * ohs, ws), sel_refs[s][...],
                         preferred_element_type=jnp.float32)
        cur = picked.reshape(tb, ohs, ows)

    o_ref[...] = cur.astype(o_ref.dtype)


def input_projection(img, sampling_times):
    """Pallas port of InputProjectionA (samplingTimes x MaxPool2d(3, 2, 1)), NCHW."""
    if sampling_times == 0:
        return img
    x = img if jnp.issubdtype(img.dtype, jnp.floating) else img.astype(jnp.float32)
    n, c, h, w = x.shape
    p = n * c

    stage_dims = []
    hs, ws = h, w
    for _ in range(sampling_times):
        ohs, ows = _pool_out_dim(hs), _pool_out_dim(ws)
        stage_dims.append((hs, ws, ohs, ows))
        hs, ws = ohs, ows
    oh_f, ow_f = hs, ws

    tb = _choose_plane_block(p, h, w, _VMEM_LIMIT)
    grid = (p // tb,)
    selbanks = [_pool_selection_bank(d[1], d[3]) for d in stage_dims]
    xr = x.reshape(p, h, w)

    kernel = functools.partial(_pool_stack_kernel, sampling_times=sampling_times,
                               tb=tb, stage_dims=tuple(stage_dims))
    in_specs = [pl.BlockSpec(sb.shape, lambda i: (0, 0)) for sb in selbanks]
    in_specs.append(pl.BlockSpec((tb, h, w), lambda i: (i, 0, 0)))

    out = pl.pallas_call(
        kernel,
        out_shape=jax.ShapeDtypeStruct((p, oh_f, ow_f), x.dtype),
        grid=grid,
        in_specs=in_specs,
        out_specs=pl.BlockSpec((tb, oh_f, ow_f), lambda i: (i, 0, 0)),
        scratch_shapes=[pltpu.VMEM((tb, h + 2, w + 2), jnp.float32)],   # shared by all stages
        compiler_params=pltpu.CompilerParams(
            dimension_semantics=("parallel",),
            vmem_limit_bytes=_VMEM_LIMIT),
    )(*selbanks, xr)
    return out.reshape(n, c, oh_f, ow_f)


# ----------------------------------------------------------------------------
# CBR (Conv3x3/s2/p1 + BN + ReLU) fused with the channel concat of the pooled image
# ----------------------------------------------------------------------------
def _cbr_concat_kernel(proj_ref, e_ref, d_ref, w_ref, b_ref, o_ref, *, ci, oh, ow, co):
    # Gather the 9 conv taps (kw parity split was done once in the wrapper): each tap
    # is a sublane-strided row pick + contiguous column slice -> (ci, OH, OW) bf16.
    slabs = []
    for src_ref, c0 in ((e_ref, 0), (d_ref, 0), (e_ref, 1)):     # kw = 0, 1, 2
        for kh in range(3):
            slabs.append(src_ref[:, pl.ds(kh, oh, 2), pl.ds(c0, ow)])
    rhs = jnp.concatenate(slabs, axis=0).reshape(9 * ci, oh * ow)   # (9*ci, OH*OW)

    # One bf16 MXU matmul (exactly the conv MACs), f32 accumulation.
    acc = jnp.dot(w_ref[...], rhs, preferred_element_type=jnp.float32)   # (COp, OH*OW)
    acc = jnp.maximum(acc + b_ref[...], 0.0)                             # BN shift + ReLU

    # Fused channel concat with the pooled image; lane-dense (nOut, OH*OW) store.
    o_ref[...] = jnp.concatenate([proj_ref[...], acc[0:co].astype(o_ref.dtype)], axis=0)


def cbr_concat_forward(x, proj, w, gamma, beta, running_mean, running_var, eps=1e-3):
    """cat([proj, ReLU(BN(Conv2d(3x3, s=2, p=1, no bias)(x)))], channel dim)."""
    # TODO(synk): BatchNorm2d uses inference (running) statistics folded into the conv;
    #             training-mode batch statistics are not computed.
    n, ci, h, win = x.shape
    co = w.shape[0]
    oh, ow = _pool_out_dim(h), _pool_out_dim(win)
    pn, pc, poh, pow_ = proj.shape
    assert (pn, poh, pow_) == (n, oh, ow), "pooled image must match conv output size"

    # Fold the BN scale into the weights; pack as (COp, kw*3*ci) bf16 for the MXU.
    scale = gamma / jnp.sqrt(running_var + eps)
    shift = beta - running_mean * scale
    ws = w.astype(jnp.float32) * scale[:, None, None, None]          # (co, ci, 3, 3)
    wmat = jnp.transpose(ws, (0, 3, 2, 1)).reshape(co, 9 * ci)       # col = kw*3ci + kh*ci + ci
    cop = ((co + 7) // 8) * 8
    wmat = jnp.pad(wmat, ((0, cop - co), (0, 0))).astype(jnp.bfloat16)
    bias = jnp.pad(shift, (0, cop - co)).reshape(cop, 1).astype(jnp.float32)

    # Zero-pad + parity-split the (ci-channel, i.e. tiny) input once in the wrapper so
    # the kernel needs no halo scratch copy and no lane-strided access:
    #   padded col c = original col c-1;  E[..., j] = col 2j,  D[..., j] = col 2j+1.
    owp = ow + 1
    xpad = jnp.pad(x, ((0, 0), (0, 0), (1, 1), (1, 2 * ow + 1 - win)))
    e = xpad[:, :, :, 0::2].astype(jnp.bfloat16)                     # (n, ci, h+2, ow+1)
    d = xpad[:, :, :, 1::2].astype(jnp.bfloat16)                     # (n, ci, h+2, ow+1)

    proj_flat = proj.astype(x.dtype).reshape(n, pc, oh * ow)
    kernel = functools.partial(_cbr_concat_kernel, ci=ci, oh=oh, ow=ow, co=co)
    out = pl.pallas_call(
        kernel,
        out_shape=jax.ShapeDtypeStruct((n, pc + co, oh * ow), x.dtype),
        grid=(n,),
        in_specs=[
            pl.BlockSpec((None, pc, oh * ow), lambda i: (i, 0, 0)),        # pooled image
            pl.BlockSpec((None, ci, h + 2, owp), lambda i: (i, 0, 0, 0)),  # even columns
            pl.BlockSpec((None, ci, h + 2, owp), lambda i: (i, 0, 0, 0)),  # odd columns
            pl.BlockSpec((cop, 9 * ci), lambda i: (0, 0)),                 # resident weights
            pl.BlockSpec((cop, 1), lambda i: (0, 0)),                      # resident BN shift
        ],
        out_specs=pl.BlockSpec((None, pc + co, oh * ow), lambda i: (i, 0, 0)),
        compiler_params=pltpu.CompilerParams(
            dimension_semantics=("parallel",),
            vmem_limit_bytes=_VMEM_LIMIT),
    )(proj_flat, e, d, wmat, bias)
    # free reshape back to NCHW (channels: [pooled image, conv output])
    return out.reshape(n, pc + co, oh, ow)


# ----------------------------------------------------------------------------
# InitBlock
# ----------------------------------------------------------------------------
class InitBlock:
    """Pallas port of InitBlock: cat([MaxPool-pyramid(img), ReLU(BN(Conv3x3/s2(input)))], 1)."""

    def __init__(self, key, nIn, nOut, kSize=3, stride=2, imgDown=1):
        assert kSize == 3 and stride == 2, "this kernel implements kSize=3, stride=2"
        co = nOut - 3
        kw_, kg, kb, km, kv = jax.random.split(key, 5)
        self.w = jax.random.normal(kw_, (co, nIn, 3, 3), jnp.float32) * 0.1
        self.gamma = 1.0 + 0.1 * jax.random.normal(kg, (co,), jnp.float32)
        self.beta = 0.1 * jax.random.normal(kb, (co,), jnp.float32)
        self.running_mean = 0.1 * jax.random.normal(km, (co,), jnp.float32)
        self.running_var = 1.0 + 0.1 * jax.random.uniform(kv, (co,), jnp.float32)
        self.eps = 1e-3
        self.imgDown = imgDown

    def __call__(self, inp, img):
        proj = input_projection(img, self.imgDown)
        return cbr_concat_forward(inp, proj, self.w, self.gamma, self.beta,
                                  self.running_mean, self.running_var, self.eps)


# ----------------------------------------------------------------------------
# Pure-JAX reference + self-check
# ----------------------------------------------------------------------------
def _reference(inp, img, blk):
    proj = img
    for _ in range(blk.imgDown):
        proj = lax.reduce_window(proj, -jnp.inf, lax.max,
                                 (1, 1, 3, 3), (1, 1, 2, 2),
                                 ((0, 0), (0, 0), (1, 1), (1, 1)))
    conv = lax.conv_general_dilated(inp, blk.w, (2, 2), ((1, 1), (1, 1)),
                                    dimension_numbers=("NCHW", "OIHW", "NCHW"),
                                    precision=lax.Precision.HIGHEST)
    scale = blk.gamma / jnp.sqrt(blk.running_var + blk.eps)
    shift = blk.beta - blk.running_mean * scale
    conv = jnp.maximum(conv * scale[None, :, None, None] + shift[None, :, None, None], 0.0)
    return jnp.concatenate([proj, conv], axis=1)


if __name__ == "__main__":
    key = jax.random.PRNGKey(0)
    k_x, k_p = jax.random.split(key)
    n, n_in, n_out, h, w = 2, 3, 19, 16, 16
    x = jax.random.normal(k_x, (n, n_in, h, w), dtype=jnp.float32)

    block = InitBlock(k_p, n_in, n_out, kSize=3, stride=2, imgDown=1)
    y = jax.block_until_ready(block(x, x))

    ref = _reference(x, x, block)
    assert y.shape == ref.shape == (n, n_out, h // 2, w // 2), (y.shape, ref.shape)
    # pooled image channels (f32 max-pool path, exact)
    assert jnp.allclose(y[:, :n_in], ref[:, :n_in], atol=1e-5, rtol=1e-5), "pool mismatch"
    # conv + BN + ReLU channels (bf16 MXU operands, f32 accumulation)
    assert jnp.allclose(y[:, n_in:], ref[:, n_in:], atol=3e-2, rtol=3e-2), "conv mismatch"
    print("KERNEL_OK")
</pallas_src>

<mosaic_0001>
module attributes {stable_mosaic.version = 11 : i64} {
  func.func @_pool_stack_kernel(%arg0: i32, %arg1: memref<16x8xf32, #tpu.memory_space<vmem>>, %arg2: memref<3x16x16xf32, #tpu.memory_space<vmem>>, %arg3: memref<3x8x8xf32, #tpu.memory_space<vmem>>, %arg4: memref<3x18x18xf32, #tpu.memory_space<vmem>>) attributes {dimension_semantics = [#tpu.dimension_semantics<parallel>], iteration_bounds = array<i64: 2>, scalar_prefetch = 0 : i64, scratch_operands = 1 : i64, tpu.core_type = #tpu.core_type<tc>, window_params = [{pipeline_mode = #tpu.pipeline_mode<synchronous>, transform_indices = @transform_0, window_bounds = array<i64: 16, 8>}, {transform_indices = @transform_1, window_bounds = array<i64: 3, 16, 16>}, {transform_indices = @transform_2, window_bounds = array<i64: 3, 8, 8>}]} {
    %c0 = arith.constant 0 : index
    %c0_0 = arith.constant 0 : index
    %c0_1 = arith.constant 0 : index
    %0 = vector.load %arg2[%c0, %c0_0, %c0_1] : memref<3x16x16xf32, #tpu.memory_space<vmem>>, vector<3x16x16xf32>
    %cst = arith.constant -3.40282347E+38 : f32
    %1 = vector.broadcast %cst : f32 to vector<3x1x18xf32>
    %c0_2 = arith.constant 0 : index
    %c0_3 = arith.constant 0 : index
    %c0_4 = arith.constant 0 : index
    %2 = vector.load %arg4[%c0_2, %c0_3, %c0_4] : memref<3x18x18xf32, #tpu.memory_space<vmem>>, vector<3x1x18xf32>
    tpu.vector_store %arg4[%c0_2, %c0_3, %c0_4], %1 {strides = array<i32>} : memref<3x18x18xf32, #tpu.memory_space<vmem>>, vector<3x1x18xf32>,
    %cst_5 = arith.constant -3.40282347E+38 : f32
    %3 = vector.broadcast %cst_5 : f32 to vector<3x1x18xf32>
    %c0_6 = arith.constant 0 : index
    %c17 = arith.constant 17 : index
    %c0_7 = arith.constant 0 : index
    %4 = vector.load %arg4[%c0_6, %c17, %c0_7] : memref<3x18x18xf32, #tpu.memory_space<vmem>>, vector<3x1x18xf32>
    tpu.vector_store %arg4[%c0_6, %c17, %c0_7], %3 {strides = array<i32>} : memref<3x18x18xf32, #tpu.memory_space<vmem>>, vector<3x1x18xf32>,
    %cst_8 = arith.constant -3.40282347E+38 : f32
    %5 = vector.broadcast %cst_8 : f32 to vector<3x16x1xf32>
    %c0_9 = arith.constant 0 : index
    %c1 = arith.constant 1 : index
    %c0_10 = arith.constant 0 : index
    %6 = vector.load %arg4[%c0_9, %c1, %c0_10] : memref<3x18x18xf32, #tpu.memory_space<vmem>>, vector<3x16x1xf32>
    tpu.vector_store %arg4[%c0_9, %c1, %c0_10], %5 {strides = array<i32>} : memref<3x18x18xf32, #tpu.memory_space<vmem>>, vector<3x16x1xf32>,
    %cst_11 = arith.constant -3.40282347E+38 : f32
    %7 = vector.broadcast %cst_11 : f32 to vector<3x16x1xf32>
    %c0_12 = arith.constant 0 : index
    %c1_13 = arith.constant 1 : index
    %c17_14 = arith.constant 17 : index
    %8 = vector.load %arg4[%c0_12, %c1_13, %c17_14] : memref<3x18x18xf32, #tpu.memory_space<vmem>>, vector<3x16x1xf32>
    tpu.vector_store %arg4[%c0_12, %c1_13, %c17_14], %7 {strides = array<i32>} : memref<3x18x18xf32, #tpu.memory_space<vmem>>, vector<3x16x1xf32>,
    %c0_15 = arith.constant 0 : index
    %c1_16 = arith.constant 1 : index
    %c1_17 = arith.constant 1 : index
    %9 = vector.load %arg4[%c0_15, %c1_16, %c1_17] : memref<3x18x18xf32, #tpu.memory_space<vmem>>, vector<3x16x16xf32>
    tpu.vector_store %arg4[%c0_15, %c1_16, %c1_17], %0 {strides = array<i32>} : memref<3x18x18xf32, #tpu.memory_space<vmem>>, vector<3x16x16xf32>,
    %c0_18 = arith.constant 0 : index
    %c0_19 = arith.constant 0 : index
    %c0_20 = arith.constant 0 : index
    %10 = tpu.strided_load %arg4[%c0_18, %c0_19, %c0_20] {strides = array<i32: 1, 2, 1>} : memref<3x18x18xf32, #tpu.memory_space<vmem>>, vector<3x8x18xf32>
    %c0_21 = arith.constant 0 : index
    %c1_22 = arith.constant 1 : index
    %c0_23 = arith.constant 0 : index
    %11 = tpu.strided_load %arg4[%c0_21, %c1_22, %c0_23] {strides = array<i32: 1, 2, 1>} : memref<3x18x18xf32, #tpu.memory_space<vmem>>, vector<3x8x18xf32>
    %12 = arith.maximumf %10, %11 : vector<3x8x18xf32>
    %c0_24 = arith.constant 0 : index
    %c2 = arith.constant 2 : index
    %c0_25 = arith.constant 0 : index
    %13 = tpu.strided_load %arg4[%c0_24, %c2, %c0_25] {strides = array<i32: 1, 2, 1>} : memref<3x18x18xf32, #tpu.memory_space<vmem>>, vector<3x8x18xf32>
    %14 = arith.maximumf %12, %13 : vector<3x8x18xf32>
    %15 = vector.extract_strided_slice %14 {offsets = [0, 0, 0], sizes = [3, 8, 16], strides = [1, 1, 1]} : vector<3x8x18xf32> to vector<3x8x16xf32>
    %16 = vector.extract_strided_slice %14 {offsets = [0, 0, 1], sizes = [3, 8, 16], strides = [1, 1, 1]} : vector<3x8x18xf32> to vector<3x8x16xf32>
    %17 = arith.maximumf %15, %16 : vector<3x8x16xf32>
    %18 = vector.extract_strided_slice %14 {offsets = [0, 0, 2], sizes = [3, 8, 16], strides = [1, 1, 1]} : vector<3x8x18xf32> to vector<3x8x16xf32>
    %19 = arith.maximumf %17, %18 : vector<3x8x16xf32>
    %20 = vector.shape_cast %19 : vector<3x8x16xf32> to vector<24x16xf32>
    %c0_26 = arith.constant 0 : index
    %c0_27 = arith.constant 0 : index
    %21 = vector.load %arg1[%c0_26, %c0_27] : memref<16x8xf32, #tpu.memory_space<vmem>>, vector<16x8xf32>
    %cst_28 = arith.constant dense<0.000000e+00> : vector<24x8xf32>
    %22 = tpu.matmul %20, %21, %cst_28 {dimension_numbers = #tpu.dot_dimension_numbers<[1], [0], [0], [1], [0, 0, 1, 1], [], []>} : vector<24x16xf32>, vector<16x8xf32>, vector<24x8xf32> -> vector<24x8xf32>
    %23 = vector.shape_cast %22 : vector<24x8xf32> to vector<3x8x8xf32>
    %c0_29 = arith.constant 0 : index
    %c0_30 = arith.constant 0 : index
    %c0_31 = arith.constant 0 : index
    %24 = vector.load %arg3[%c0_29, %c0_30, %c0_31] : memref<3x8x8xf32, #tpu.memory_space<vmem>>, vector<3x8x8xf32>
    tpu.vector_store %arg3[%c0_29, %c0_30, %c0_31], %23 {strides = array<i32>} : memref<3x8x8xf32, #tpu.memory_space<vmem>>, vector<3x8x8xf32>,
    return
  }
  func.func @transform_0(%arg0: i32) -> (i32, i32) {
    %c0_i32 = arith.constant 0 : i32
    %c0_i32_0 = arith.constant 0 : i32
    %c0_i32_1 = arith.constant 0 : i32
    return %c0_i32, %c0_i32_0 : i32, i32
  }
  func.func @transform_1(%arg0: i32) -> (i32, i32, i32) {
    %c0_i32 = arith.constant 0 : i32
    %c0_i32_0 = arith.constant 0 : i32
    %c0_i32_1 = arith.constant 0 : i32
    return %arg0, %c0_i32, %c0_i32_0 : i32, i32, i32
  }
  func.func @transform_2(%arg0: i32) -> (i32, i32, i32) {
    %c0_i32 = arith.constant 0 : i32
    %c0_i32_0 = arith.constant 0 : i32
    %c0_i32_1 = arith.constant 0 : i32
    return %arg0, %c0_i32, %c0_i32_0 : i32, i32, i32
  }
}

</mosaic_0001>

<llo_original>
// kernel: tpu_custom_call.1
$region0: #{tpu_custom_call.1}
  #allocation0 [shape = 'u32[]', space=smem, size = 0x4, offset = 0x4, fixed_abs, tag = 'smem constant byte address 0x4 - core index']
  #allocation1 [shape = 'u32[144,128]{1,0:T(1,128)}', space=vmem, size = 0x12000, scoped, tag = 'internal scratch']
  #allocation2 [shape = 'f32[3,18,18]{2,1,0:T(8,128)}', space=vmem, size = 0x9000, scoped, tag = 'scratch operand']
  %s0 = inlined_call_operand.vmem [shape: f32[16,8], index: 0, kind: input, shape index: {}]
  %s1 = inlined_call_operand.hbm [shape: f32[6,16,16], index: 1, kind: input, shape index: {}]
  %s2 = inlined_call_operand.hbm [shape: f32[6,8,8], index: 2, kind: output, shape index: {}]
  %s3 = sld [smem:[#allocation0]]
  $region45: #{tpu_custom_call.1} parent=0
    _
  %s5 = ssub.s32 1, %s3
  %s6 = scalar_select 0, %s5, %s3
  $region1: #{tpu_custom_call.1} parent=0
    #allocation3 [shape = 'u8[49152]{0}', space=vmem, size = 0xc000, scoped, tag = 'input window, operand 1']
    #allocation4 [shape = 's32[2]{0}', space=sflag, size = 0x8, scoped, tag = 'scoped memory for tpu_custom_call.1']
    #allocation5 [shape = 's32[2]{0}', space=sflag, size = 0x8, scoped, tag = 'scoped memory for tpu_custom_call.1']
    #allocation6 [shape = 'u8[24576]{0}', space=vmem, size = 0x6000, scoped, tag = 'output window, operand 0']
    %7 = vsyncpa [#allocation4], 0
    %s8 = scalar_lea.sflag [#allocation4], 1
    %9 = vsyncpa %s8, 0
    %10 = vsyncpa [#allocation5], 0
    %s11 = scalar_lea.sflag [#allocation5], 1
    %12 = vsyncpa %s11, 0
    loop: start=0, step=1, limit=4
    $region2: #{tpu_custom_call.1} parent=1 // loop_pre_header
      _
    $region3: #{tpu_custom_call.1} parent=1 // loop_header
      %s14 = sphi 0, %s18
      %p15 = scmp.ge.s32.totalorder %s14, 4
      %s22 = sphi 0, %s22
      %s24 = sphi 0, %s22
      %s25 = sphi 0, %s24
      %s39 = sphi 0, %s25
      %s45 = sphi 0, %s47
      %s48 = sphi 0, %s45
      %s49 = sphi 0, %s48
      %s65 = sphi 0, %s49
      %s71 = sphi 0, %s73
      %s74 = sphi 0, %s71
      %s75 = sphi 0, %s74
      %s91 = sphi 0, %s75
    $region4: #{tpu_custom_call.1} parent=1 // loop_header_branch
      %17 = sbr.rel (%p15) target = $region8
    $region5: #{tpu_custom_call.1} parent=1 // loop_body
      %s19 = ssub.s32 %s14, 1
      %s20 = ssub.s32 %s14, 2
      %s21 = sadd.s32 %s14, 1
      %s23 = sadd.s32 %s22, 1
      %p26 = scmp.eq.s32.totalorder %s14, 1
      %p27 = scmp.ne.s32.totalorder %s22, %s24
      %p28 = scmp.eq.s32.totalorder %s14, 0
      %p29 = por %p27, %p28
      %p30 = scmp.ne.s32.totalorder %s22, %s24
      %p31 = scmp.eq.s32.totalorder %s19, 1
      %p32 = por %p30, %p31
      %p33 = scmp.ne.s32.totalorder %s24, %s25
      %p34 = scmp.eq.s32.totalorder %s19, 0
      %p35 = por %p33, %p34
      %p36 = scmp.ne.s32.totalorder %s24, %s25
      %p37 = scmp.eq.s32.totalorder %s20, 1
      %p38 = por %p36, %p37
      %p40 = scmp.ne.s32.totalorder %s25, %s39
      %p41 = scmp.eq.s32.totalorder %s20, 0
      %p42 = por %p40, %p41
      %s43 = ssub.s32 %s14, %s21
      %p44 = scmp.eq.s32.totalorder %s43, 0
      %s46 = sadd.s32 %s45, 1
      %s47 = scalar_select %p44, %s45, %s46
      %p50 = pneg %p44
      %p51 = scmp.eq.s32.totalorder %s14, 1
      %p52 = por %p50, %p51
      %p53 = scmp.ne.s32.totalorder %s45, %s48
      %p54 = scmp.eq.s32.totalorder %s14, 0
      %p55 = por %p53, %p54
      %p56 = scmp.ne.s32.totalorder %s45, %s48
      %p57 = scmp.eq.s32.totalorder %s19, 1
      %p58 = por %p56, %p57
      %p59 = scmp.ne.s32.totalorder %s48, %s49
      %p60 = scmp.eq.s32.totalorder %s19, 0
      %p61 = por %p59, %p60
      %p62 = scmp.ne.s32.totalorder %s48, %s49
      %p63 = scmp.eq.s32.totalorder %s20, 1
      %p64 = por %p62, %p63
      %p66 = scmp.ne.s32.totalorder %s49, %s65
      %p67 = scmp.eq.s32.totalorder %s20, 0
      %p68 = por %p66, %p67
      %s69 = ssub.s32 %s14, %s21
      %p70 = scmp.eq.s32.totalorder %s69, 0
      %s72 = sadd.s32 %s71, 1
      %s73 = scalar_select %p70, %s71, %s72
      %p76 = pneg %p70
      %p77 = scmp.eq.s32.totalorder %s14, 1
      %p78 = por %p76, %p77
      %p79 = scmp.ne.s32.totalorder %s71, %s74
      %p80 = scmp.eq.s32.totalorder %s14, 0
      %p81 = por %p79, %p80
      %p82 = scmp.ne.s32.totalorder %s71, %s74
      %p83 = scmp.eq.s32.totalorder %s19, 1
      %p84 = por %p82, %p83
      %p85 = scmp.ne.s32.totalorder %s74, %s75
      %p86 = scmp.eq.s32.totalorder %s19, 0
      %p87 = por %p85, %p86
      %p88 = scmp.ne.s32.totalorder %s74, %s75
      %p89 = scmp.eq.s32.totalorder %s20, 1
      %p90 = por %p88, %p89
      %p92 = scmp.ne.s32.totalorder %s75, %s91
      %p93 = scmp.eq.s32.totalorder %s20, 0
      %p94 = por %p92, %p93
      %p95 = scmp.le.s32.totalorder 1, %s14
      %p96 = scmp.lt.s32.totalorder %s14, 3
      %p97 = pnand %p95, %p96
      %p98 = pneg %p97
      // Predicated region
      $region9: #{tpu_custom_call.1} parent=5 // pred_check
        _
      $region10: #{tpu_custom_call.1} parent=5 // pred_check_branch
        %100 = sbr.rel (%p97) target = $region12
      $region11: #{tpu_custom_call.1} parent=5 // pred_region
        %s101 = ssub.s32 %s14, 1
        // Predicated region
        $region13: #{tpu_custom_call.1} parent=11 // pred_check
          %p102 = pneg %p35
        $region14: #{tpu_custom_call.1} parent=11 // pred_check_branch
          %104 = sbr.rel (%p102) target = $region16
        $region15: #{tpu_custom_call.1} parent=11 // pred_region
          _
        $region16: #{tpu_custom_call.1} parent=11 // pred_fallthru
          _
      $region12: #{tpu_custom_call.1} parent=5 // pred_fallthru
        _
      %p105 = scmp.lt.s32.totalorder %s14, 2
      // Predicated region
      $region17: #{tpu_custom_call.1} parent=5 // pred_check
        %p106 = pneg %p105
      $region18: #{tpu_custom_call.1} parent=5 // pred_check_branch
        %108 = sbr.rel (%p106) target = $region20
      $region19: #{tpu_custom_call.1} parent=5 // pred_region
        // Predicated region
        $region21: #{tpu_custom_call.1} parent=19 // pred_check
          %p109 = pneg %p55
        $region22: #{tpu_custom_call.1} parent=19 // pred_check_branch
          %111 = sbr.rel (%p109) target = $region24
        $region23: #{tpu_custom_call.1} parent=19 // pred_region
          %s112 = sand.u32 %s45, 1
          %s113 = scalar_lea.sflag [#allocation4], %s112
          %s114 = sand.u32 %s45, 1
          %s115 = smul.addr %s114, 48
          %s116 = scalar_lea.vmem [#allocation3], %s115
          %s117 = smul.u32 3, %s14
          %s119 = ssub.s32 768, 768
          %120 = vsyncadd %s113, %s119
          %s121 = smul.addr %s117, 2
          %s122 = smul.addr %s121, 128
          %s123 = scalar_lea.hbm %s1, %s122
          %s124 = sshll.u32 %s116, 4
          %s125 = int_to_ptr.vmem [resolvable:$true] %s124
          %130 = dma.hbm_to_vmem [thread:$0]  %s123, 768, %s125, %s113, 128, 128, 8
        $region24: #{tpu_custom_call.1} parent=19 // pred_fallthru
          _
      $region20: #{tpu_custom_call.1} parent=5 // pred_fallthru
        _
      %p131 = scmp.le.s32.totalorder 1, %s14
      %p132 = scmp.lt.s32.totalorder %s14, 3
      %p133 = pnand %p131, %p132
      %p134 = pneg %p133
      // Predicated region
      $region25: #{tpu_custom_call.1} parent=5 // pred_check
        _
      $region26: #{tpu_custom_call.1} parent=5 // pred_check_branch
        %136 = sbr.rel (%p133) target = $region28
      $region27: #{tpu_custom_call.1} parent=5 // pred_region
        %s137 = ssub.s32 %s14, 1
        %s138 = sand.u32 %s48, 1
        %s139 = scalar_lea.sflag [#allocation4], %s138
        %s140 = sand.u32 %s48, 1
        %s141 = smul.addr %s140, 48
        %s142 = scalar_lea.vmem [#allocation3], %s141
        // Predicated region
        $region29: #{tpu_custom_call.1} parent=27 // pred_check
          %p143 = pneg %p61
        $region30: #{tpu_custom_call.1} parent=27 // pred_check_branch
          %145 = sbr.rel (%p143) target = $region32
        $region31: #{tpu_custom_call.1} parent=27 // pred_region
          %146 = dma.done %s139, 768
        $region32: #{tpu_custom_call.1} parent=27 // pred_fallthru
          _
        %p147 = pneg %p35
        %p148 = pneg %p32
        %s149 = sand.u32 %s48, 1
        %s150 = scalar_lea.sflag [#allocation4], %s149
        %s151 = sand.u32 %s48, 1
        %s152 = smul.addr %s151, 48
        %s153 = scalar_lea.vmem [#allocation3], %s152
        %p154 = pneg %p61
        %p155 = pneg %p58
        %p156 = pneg %p87
        %p157 = pneg %p84
        %s158 = sand.u32 %s74, 1
        %s159 = scalar_lea.sflag [#allocation5], %s158
        %s160 = sand.u32 %s74, 1
        %s161 = smul.addr %s160, 24
        %s162 = scalar_lea.vmem [#allocation6], %s161
        %s163 = smul.u32 3, %s19
        %s164 = smul.u32 3, %s19
        %v165 = vld [vmem:[%s142] sm:$0xff]
        %v166 = vld [vmem:[%s142 + $0x8] sm:$0xff]
        %v167 = vld [vmem:[%s142 + $0x10] sm:$0xff]
        %v168 = vld [vmem:[%s142 + $0x18] sm:$0xff]
        %v169 = vld [vmem:[%s142 + $0x20] sm:$0xff]
        %v170 = vld [vmem:[%s142 + $0x28] sm:$0xff]
        %vm171 = vcmask 139264
        %172 = vst.msk [vmem:[#allocation2] sm:$0x1] %vm171, -3.4028235e+38
        %173 = vst.msk [vmem:[#allocation2 + $0x18] sm:$0x1] %vm171, -3.4028235e+38
        %174 = vst.msk [vmem:[#allocation2 + $0x30] sm:$0x1] %vm171, -3.4028235e+38
        %175 = vst.msk [vmem:[#allocation2 + $0x11] sm:$0x1] %vm171, -3.4028235e+38
        %176 = vst.msk [vmem:[#allocation2 + $0x29] sm:$0x1] %vm171, -3.4028235e+38
        %177 = vst.msk [vmem:[#allocation2 + $0x41] sm:$0x1] %vm171, -3.4028235e+38
        %vm178 = vcmask 7168
        %179 = vst.msk [vmem:[#allocation2 + $0x1] sm:$0xff] %vm178, -3.4028235e+38
        %180 = vst.msk [vmem:[#allocation2 + $0x9] sm:$0xff] %vm178, -3.4028235e+38
        %181 = vst.msk [vmem:[#allocation2 + $0x19] sm:$0xff] %vm178, -3.4028235e+38
        %182 = vst.msk [vmem:[#allocation2 + $0x21] sm:$0xff] %vm178, -3.4028235e+38
        %183 = vst.msk [vmem:[#allocation2 + $0x31] sm:$0xff] %vm178, -3.4028235e+38
        %184 = vst.msk [vmem:[#allocation2 + $0x39] sm:$0xff] %vm178, -3.4028235e+38
        %vm185 = vcmask 146568
        %186 = vst.msk [vmem:[#allocation2 + $0x1] sm:$0xff] %vm185, -3.4028235e+38
        %187 = vst.msk [vmem:[#allocation2 + $0x9] sm:$0xff] %vm185, -3.4028235e+38
        %188 = vst.msk [vmem:[#allocation2 + $0x19] sm:$0xff] %vm185, -3.4028235e+38
        %189 = vst.msk [vmem:[#allocation2 + $0x21] sm:$0xff] %vm185, -3.4028235e+38
        %190 = vst.msk [vmem:[#allocation2 + $0x31] sm:$0xff] %vm185, -3.4028235e+38
        %191 = vst.msk [vmem:[#allocation2 + $0x39] sm:$0xff] %vm185, -3.4028235e+38
        %198 = vrot.lane.b32.xlu0 %v165, 1
        %v199 = vpop.permute.xlu0 %198
        %200 = vrot.lane.b32.xlu0 %v166, 1
        %v201 = vpop.permute.xlu0 %200
        %202 = vrot.lane.b32.xlu0 %v167, 1
        %v203 = vpop.permute.xlu0 %202
        %204 = vrot.lane.b32.xlu0 %v168, 1
        %v205 = vpop.permute.xlu0 %204
        %206 = vrot.lane.b32.xlu0 %v169, 1
        %v207 = vpop.permute.xlu0 %206
        %208 = vrot.lane.b32.xlu0 %v170, 1
        %v209 = vpop.permute.xlu0 %208
        %vm216 = vcmask 138248
        %217 = vst.msk [vmem:[#allocation2 + $0x1] sm:$0xff] %vm216, %v199
        %218 = vst.msk [vmem:[#allocation2 + $0x9] sm:$0xff] %vm216, %v201
        %219 = vst.msk [vmem:[#allocation2 + $0x19] sm:$0xff] %vm216, %v203
        %220 = vst.msk [vmem:[#allocation2 + $0x21] sm:$0xff] %vm216, %v205
        %221 = vst.msk [vmem:[#allocation2 + $0x31] sm:$0xff] %vm216, %v207
        %222 = vst.msk [vmem:[#allocation2 + $0x39] sm:$0xff] %vm216, %v209
        %v223 = vld [vmem:[#allocation2] ss:$2 sm:$0xff]
        %s224 = scalar_lea.vmem [#allocation2], 24
        %v225 = vld [vmem:[%s224] ss:$2 sm:$0xff]
        %s226 = scalar_lea.vmem [#allocation2], 48
        %v227 = vld [vmem:[%s226] ss:$2 sm:$0xff]
        %s228 = scalar_lea.vmem [#allocation2], 1
        %v229 = vld [vmem:[%s228] ss:$2 sm:$0xff]
        %s230 = scalar_lea.vmem [#allocation2], 25
        %v231 = vld [vmem:[%s230] ss:$2 sm:$0xff]
        %s232 = scalar_lea.vmem [#allocation2], 49
        %v233 = vld [vmem:[%s232] ss:$2 sm:$0xff]
        %v234 = vmax.f32 %v223, %v229
        %v235 = vmax.f32 %v225, %v231
        %v236 = vmax.f32 %v227, %v233
        %s237 = scalar_lea.vmem [#allocation2], 2
        %v238 = vld [vmem:[%s237] ss:$2 sm:$0xff]
        %s239 = scalar_lea.vmem [#allocation2], 26
        %v240 = vld [vmem:[%s239] ss:$2 sm:$0xff]
        %s241 = scalar_lea.vmem [#allocation2], 50
        %v242 = vld [vmem:[%s241] ss:$2 sm:$0xff]
        %v243 = vmax.f32 %v234, %v238
        %v244 = vmax.f32 %v235, %v240
        %v245 = vmax.f32 %v236, %v242
        %249 = vrot.lane.b32.xlu0 %v243, 127
        %v250 = vpop.permute.xlu0 %249
        %251 = vrot.lane.b32.xlu0 %v244, 127
        %v252 = vpop.permute.xlu0 %251
        %253 = vrot.lane.b32.xlu0 %v245, 127
        %v254 = vpop.permute.xlu0 %253
        %v258 = vmax.f32 %v243, %v250
        %v259 = vmax.f32 %v244, %v252
        %v260 = vmax.f32 %v245, %v254
        %261 = vrot.lane.b32.xlu0 %v243, 126
        %v262 = vpop.permute.xlu0 %261
        %263 = vrot.lane.b32.xlu0 %v244, 126
        %v264 = vpop.permute.xlu0 %263
        %265 = vrot.lane.b32.xlu0 %v245, 126
        %v266 = vpop.permute.xlu0 %265
        %v270 = vmax.f32 %v258, %v262
        %v271 = vmax.f32 %v259, %v264
        %v272 = vmax.f32 %v260, %v266
        %v273 = vld [vmem:[%s0] sm:$0xff]
        %v274 = vld [vmem:[%s0 + $0x8] sm:$0xff]
        %vm275 = vcmask 130048
        %v277 = vsel %vm275, %v270, 0
        %v280 = vsel %vm275, %v271, 0
        %v283 = vsel %vm275, %v272, 0
        %285 = vmatprep.subr.mxu0 0.0
        %286 = vmatpush1.msra.mxu0 %v273
        %287 = vmatprep.subr.mxu0 0.0
        %288 = vmatpush1.msra.mxu0 %v274
        %289 = vmatprep.subr.mxu0 0.0
        %290 = vmatpush1.msra.mxu0 0.0
        %291 = vmatprep.subr.mxu0 0.0
        %292 = vmatpush1.msra.mxu0 0.0
        %293 = vmatprep.subr.mxu0 0.0
        %294 = vmatpush1.msra.mxu0 0.0
        %295 = vmatprep.subr.mxu0 0.0
        %296 = vmatpush1.msra.mxu0 0.0
        %297 = vmatprep.subr.mxu0 0.0
        %298 = vmatpush1.msra.mxu0 0.0
        %299 = vmatprep.subr.mxu0 0.0
        %300 = vmatpush1.msra.mxu0 0.0
        %301 = vmatprep.subr.mxu0 0.0
        %302 = vmatpush1.msra.mxu0 0.0
        %303 = vmatprep.subr.mxu0 0.0
        %304 = vmatpush1.msra.mxu0 0.0
        %305 = vmatprep.subr.mxu0 0.0
        %306 = vmatpush1.msra.mxu0 0.0
        %307 = vmatprep.subr.mxu0 0.0
        %308 = vmatpush1.msra.mxu0 0.0
        %309 = vmatprep.subr.mxu0 0.0
        %310 = vmatpush1.msra.mxu0 0.0
        %311 = vmatprep.subr.mxu0 0.0
        %312 = vmatpush1.msra.mxu0 0.0
        %313 = vmatprep.subr.mxu0 0.0
        %314 = vmatpush1.msra.mxu0 0.0
        %315 = vmatprep.subr.mxu0 0.0
        %316 = vmatpush1.msra.mxu0 0.0
        %317 = vmatprep.subr.mxu0 0.0
        %318 = vmatpush1.msra.mxu0 0.0
        %319 = vmatprep.subr.mxu0 0.0
        %320 = vmatpush1.msra.mxu0 0.0
        %321 = vmatprep.subr.mxu0 0.0
        %322 = vmatpush1.msra.mxu0 0.0
        %323 = vmatprep.subr.mxu0 0.0
        %324 = vmatpush1.msra.mxu0 0.0
        %325 = vmatprep.subr.mxu0 0.0
        %326 = vmatpush1.msra.mxu0 0.0
        %327 = vmatprep.subr.mxu0 0.0
        %328 = vmatpush1.msra.mxu0 0.0
        %329 = vmatprep.subr.mxu0 0.0
        %330 = vmatpush1.msra.mxu0 0.0
        %331 = vmatprep.subr.mxu0 0.0
        %332 = vmatpush1.msra.mxu0 0.0
        %333 = vmatprep.subr.mxu0 0.0
        %334 = vmatpush1.msra.mxu0 0.0
        %335 = vmatprep.subr.mxu0 0.0
        %336 = vmatpush1.msra.mxu0 0.0
        %337 = vmatprep.subr.mxu0 0.0
        %338 = vmatpush1.msra.mxu0 0.0
        %339 = vmatprep.subr.mxu0 0.0
        %340 = vmatpush1.msra.mxu0 0.0
        %341 = vmatprep.subr.mxu0 0.0
        %342 = vmatpush1.msra.mxu0 0.0
        %343 = vmatprep.subr.mxu0 0.0
        %344 = vmatpush1.msra.mxu0 0.0
        %345 = vmatprep.subr.mxu0 0.0
        %346 = vmatpush1.msra.mxu0 0.0
        %347 = vmatprep.subr.mxu0 0.0
        %348 = vmatpush1.msra.mxu0 0.0
        %349 = vmatprep.mubr.f32.mxu0 0.0
        %350 = vmatmul.mubr.f32.gmra.mrb[0].mxu0 %v277
        %v351 = vpop.f32.mrb[0].mxu0
        %v352 = vadd.f32 0.0, %v351
        %v353 = vpop.f32.mrb[0].mxu0
        %354 = vmatprep.mubr.f32.mxu0 0.0
        %355 = vmatmul.mubr.f32.gmra.mrb[0].mxu0 %v280
        %v356 = vpop.f32.mrb[0].mxu0
        %v357 = vadd.f32 0.0, %v356
        %v358 = vpop.f32.mrb[0].mxu0
        %359 = vmatprep.mubr.f32.mxu0 0.0
        %360 = vmatmul.mubr.f32.gmra.mrb[0].mxu0 %v283
        %v361 = vpop.f32.mrb[0].mxu0
        %v362 = vadd.f32 0.0, %v361
        %v363 = vpop.f32.mrb[0].mxu0
        %364 = vdwg.mxu0
        %vm365 = vcmask 64512
        %366 = vst.msk [vmem:[%s162] sm:$0xff] %vm365, %v352
        %367 = vst.msk [vmem:[%s162 + $0x8] sm:$0xff] %vm365, %v357
        %368 = vst.msk [vmem:[%s162 + $0x10] sm:$0xff] %vm365, %v362
        %s369 = sand.u32 %s74, 1
        %s370 = scalar_lea.sflag [#allocation5], %s369
        %s371 = sand.u32 %s74, 1
        %s372 = smul.addr %s371, 24
        %s373 = scalar_lea.vmem [#allocation6], %s372
        // Predicated region
        $region33: #{tpu_custom_call.1} parent=27 // pred_check
          %p374 = pneg %p84
        $region34: #{tpu_custom_call.1} parent=27 // pred_check_branch
          %376 = sbr.rel (%p374) target = $region36
        $region35: #{tpu_custom_call.1} parent=27 // pred_region
          %s377 = smul.u32 3, %s19
          %s379 = ssub.s32 384, 384
          %380 = vsyncadd %s370, %s379
          %s381 = smul.addr %s377, 128
          %s382 = scalar_lea.hbm %s2, %s381
          %s383 = sshll.u32 %s373, 4
          %s384 = int_to_ptr.vmem [resolvable:$true] %s383
          %389 = dma.vmem_to_hbm [thread:$0]  %s384, 384, %s382, %s370, 128, 128, 8
        $region36: #{tpu_custom_call.1} parent=27 // pred_fallthru
          _
      $region28: #{tpu_custom_call.1} parent=5 // pred_fallthru
        _
      %p390 = scmp.le.s32.totalorder 2, %s14
      // Predicated region
      $region37: #{tpu_custom_call.1} parent=5 // pred_check
        %p391 = pneg %p390
      $region38: #{tpu_custom_call.1} parent=5 // pred_check_branch
        %393 = sbr.rel (%p391) target = $region40
      $region39: #{tpu_custom_call.1} parent=5 // pred_region
        %s394 = ssub.s32 %s14, 2
        // Predicated region
        $region41: #{tpu_custom_call.1} parent=39 // pred_check
          %p395 = pneg %p90
        $region42: #{tpu_custom_call.1} parent=39 // pred_check_branch
          %397 = sbr.rel (%p395) target = $region44
        $region43: #{tpu_custom_call.1} parent=39 // pred_region
          %s398 = sand.u32 %s75, 1
          %s399 = scalar_lea.sflag [#allocation5], %s398
          %s400 = sand.u32 %s75, 1
          %s401 = smul.addr %s400, 24
          %s402 = scalar_lea.vmem [#allocation6], %s401
          %403 = dma.done %s399, 384
        $region44: #{tpu_custom_call.1} parent=39 // pred_fallthru
          _
      $region40: #{tpu_custom_call.1} parent=5 // pred_fallthru
        _
    $region6: #{tpu_custom_call.1} parent=1 // loop_footer
      %s18 = sadd.s32 1, %s14
    $region7: #{tpu_custom_call.1} parent=1 // loop_footer_branch
      %13 = sbr.rel target = $region3
    $region8: #{tpu_custom_call.1} parent=1 // loop_exit
      _
    %404 = vsyncpa [#allocation4], 1
    %s405 = scalar_lea.sflag [#allocation4], 1
    %406 = vsyncpa %s405, 1
    %407 = vsyncpa [#allocation5], 1
    %s408 = scalar_lea.sflag [#allocation5], 1
    %409 = vsyncpa %s408, 1

</llo_original>
